<compile_context>
chip_gen: v6e
topology: v6e:2x2x1
jax: 0.10.0
libtpu: 0.0.40
codegen_flags: <defaults>
</compile_context>

<pallas_src>
import functools

import jax
import jax.numpy as jnp
from jax.experimental import pallas as pl
from jax.experimental.pallas import tpu as pltpu


def _round_up(x: int, m: int) -> int:
    return ((x + m - 1) // m) * m


def _sigmoid_f32(z):
    # 1 / (1 + exp(-z)): exp on the EUP, approximate reciprocal on the EUP
    # vrcp slot (relative error ~2^-14, well inside f32 test tolerance).
    return pl.reciprocal(1.0 + jnp.exp(-z), approx=True)


def _logreg_kernel_fused(x_ref, w_ref, b_ref, o_ref):
    """Single K tile: fused matmul + bias + sigmoid, no scratch accumulator."""
    z = jnp.dot(x_ref[...], w_ref[...],
                preferred_element_type=jnp.float32) + b_ref[...]
    o_ref[...] = _sigmoid_f32(z).astype(o_ref.dtype)


def _logreg_kernel_ktiled(x_ref, w_ref, b_ref, o_ref, acc_ref):
    """One (batch-tile, K-tile) grid step of sigmoid(x @ W + b)."""
    k = pl.program_id(1)

    @pl.when(k == 0)
    def _():
        acc_ref[...] = jnp.zeros_like(acc_ref)

    # Partial product on the MXU, accumulated in f32 in resident VMEM scratch.
    acc_ref[...] += jnp.dot(x_ref[...], w_ref[...],
                            preferred_element_type=jnp.float32)

    @pl.when(k == pl.num_programs(1) - 1)
    def _():
        z = acc_ref[...] + b_ref[...]
        o_ref[...] = _sigmoid_f32(z).astype(o_ref.dtype)


@functools.partial(jax.jit)
def logistic_regression_forward(x, w, b):
    """sigmoid(x @ w.T + b)

    x: [B, D_in] f32, w: [D_out, D_in] f32 (PyTorch nn.Linear layout),
    b: [D_out] f32.  Returns [B, D_out] f32.
    """
    B, D_in = x.shape
    D_out, _ = w.shape
    dtype = jnp.float32

    # ---- tiling / padding (lane-dense layouts, MXU-friendly tiles) ----
    D_out_p = _round_up(D_out, 128)            # lane-dense output stores
    D_in_p = _round_up(D_in, 128)              # lane-dense x loads / MXU K
    if D_in_p <= 1024:
        TK = D_in_p                            # single K step -> fused kernel
    else:
        TK = 512                               # K-tiled accumulation
        D_in_p = _round_up(D_in_p, TK)
    TB = min(512, _round_up(B, 8))             # big batch tiles when possible
    B_p = _round_up(B, TB)
    nk = D_in_p // TK

    # Zero-pad operands: padded K rows/cols contribute 0 to the matmul;
    # padded batch rows / output cols are sliced away below.
    x_p = jnp.zeros((B_p, D_in_p), dtype).at[:B, :D_in].set(x.astype(dtype))
    w_t_p = jnp.zeros((D_in_p, D_out_p), dtype).at[:D_in, :D_out].set(
        jnp.transpose(w).astype(dtype))
    b_p = jnp.zeros((1, D_out_p), dtype).at[0, :D_out].set(b.astype(dtype))

    # VMEM budget: double-buffered x/W/out tiles + resident bias + f32 acc.
    tile_bytes = 4 * (2 * TB * TK + 2 * TK * D_out_p + 2 * 8 * D_out_p
                      + 2 * TB * D_out_p + TB * D_out_p)
    vmem_limit = min(max(2 * tile_bytes, 16 * 1024 * 1024), 32 * 1024 * 1024)

    if nk == 1:
        # Fused single-pass kernel: 1-D batch grid, W/bias resident in VMEM.
        out_p = pl.pallas_call(
            _logreg_kernel_fused,
            out_shape=jax.ShapeDtypeStruct((B_p, D_out_p), dtype),
            grid_spec=pltpu.PrefetchScalarGridSpec(
                num_scalar_prefetch=0,
                grid=(B_p // TB,),
                in_specs=[
                    pl.BlockSpec((TB, TK), lambda i: (i, 0)),
                    pl.BlockSpec((TK, D_out_p), lambda i: (0, 0)),
                    pl.BlockSpec((1, D_out_p), lambda i: (0, 0)),
                ],
                out_specs=pl.BlockSpec((TB, D_out_p), lambda i: (i, 0)),
            ),
            compiler_params=pltpu.CompilerParams(
                dimension_semantics=("parallel",),
                vmem_limit_bytes=vmem_limit,
            ),
        )(x_p, w_t_p, b_p)
    else:
        # K-tiled kernel with resident f32 accumulator.
        out_p = pl.pallas_call(
            _logreg_kernel_ktiled,
            out_shape=jax.ShapeDtypeStruct((B_p, D_out_p), dtype),
            grid_spec=pltpu.PrefetchScalarGridSpec(
                num_scalar_prefetch=0,
                grid=(B_p // TB, nk),
                in_specs=[
                    # x tile marches over batch (i) and reduction (k).
                    pl.BlockSpec((TB, TK), lambda i, k: (i, k)),
                    # W tile depends only on k -> resident across batch tiles.
                    pl.BlockSpec((TK, D_out_p), lambda i, k: (k, 0)),
                    # Bias: constant block index -> resident in VMEM.
                    pl.BlockSpec((1, D_out_p), lambda i, k: (0, 0)),
                ],
                out_specs=pl.BlockSpec((TB, D_out_p), lambda i, k: (i, 0)),
                scratch_shapes=[pltpu.VMEM((TB, D_out_p), jnp.float32)],
            ),
            compiler_params=pltpu.CompilerParams(
                dimension_semantics=("parallel", "arbitrary"),
                vmem_limit_bytes=vmem_limit,
            ),
        )(x_p, w_t_p, b_p)

    return out_p[:B, :D_out]


if __name__ == "__main__":
    # Small shapes consistent with LogisticRegression(input_dim, output_dim).
    B, D_in, D_out = 8, 32, 8

    key = jax.random.PRNGKey(0)
    kx, kw, kb = jax.random.split(key, 3)

    x = jax.random.normal(kx, (B, D_in), dtype=jnp.float32)

    # Deterministic nn.Linear-style init: U(-1/sqrt(in), 1/sqrt(in)).
    bound = 1.0 / (D_in ** 0.5)
    w = jax.random.uniform(kw, (D_out, D_in), minval=-bound, maxval=bound,
                           dtype=jnp.float32)  # PyTorch layout [out, in]
    b = jax.random.uniform(kb, (D_out,), minval=-bound, maxval=bound,
                           dtype=jnp.float32)

    out = logistic_regression_forward(x, w, b)
    out = jax.block_until_ready(out)

    # Sanity check against a pure-JAX reference.  Tolerance accounts for the
    # EUP approximate reciprocal used for the sigmoid.
    ref = jax.nn.sigmoid(x @ w.T + b)
    assert out.shape == (B, D_out)
    assert jnp.allclose(out, ref, atol=2e-3, rtol=2e-3), float(
        jnp.max(jnp.abs(out - ref)))

    print("KERNEL_OK")
</pallas_src>

<mosaic_0001>
module attributes {stable_mosaic.version = 11 : i64} {
  func.func @_logreg_kernel_fused(%arg0: i32, %arg1: memref<8x128xf32, #tpu.memory_space<vmem>>, %arg2: memref<128x128xf32, #tpu.memory_space<vmem>>, %arg3: memref<1x128xf32, #tpu.memory_space<vmem>>, %arg4: memref<8x128xf32, #tpu.memory_space<vmem>>) attributes {dimension_semantics = [#tpu.dimension_semantics<parallel>], iteration_bounds = array<i64: 1>, scalar_prefetch = 0 : i64, scratch_operands = 0 : i64, tpu.core_type = #tpu.core_type<tc>, window_params = [{transform_indices = @transform_0, window_bounds = array<i64: 8, 128>}, {pipeline_mode = #tpu.pipeline_mode<synchronous>, transform_indices = @transform_1, window_bounds = array<i64: 128, 128>}, {pipeline_mode = #tpu.pipeline_mode<synchronous>, transform_indices = @transform_2, window_bounds = array<i64: 1, 128>}, {transform_indices = @transform_3, window_bounds = array<i64: 8, 128>}]} {
    %c0 = arith.constant 0 : index
    %c0_0 = arith.constant 0 : index
    %0 = vector.load %arg1[%c0, %c0_0] : memref<8x128xf32, #tpu.memory_space<vmem>>, vector<8x128xf32>
    %c0_1 = arith.constant 0 : index
    %c0_2 = arith.constant 0 : index
    %1 = vector.load %arg2[%c0_1, %c0_2] : memref<128x128xf32, #tpu.memory_space<vmem>>, vector<128x128xf32>
    %cst = arith.constant dense<0.000000e+00> : vector<8x128xf32>
    %2 = tpu.matmul %0, %1, %cst {dimension_numbers = #tpu.dot_dimension_numbers<[1], [0], [0], [1], [0, 0, 1, 1], [], []>} : vector<8x128xf32>, vector<128x128xf32>, vector<8x128xf32> -> vector<8x128xf32>
    %c0_3 = arith.constant 0 : index
    %c0_4 = arith.constant 0 : index
    %3 = vector.load %arg3[%c0_3, %c0_4] : memref<1x128xf32, #tpu.memory_space<vmem>>, vector<1x128xf32>
    %4 = vector.broadcast %3 : vector<1x128xf32> to vector<8x128xf32>
    %5 = arith.addf %2, %4 : vector<8x128xf32>
    %cst_5 = arith.constant 0.000000e+00 : f32
    %6 = vector.broadcast %cst_5 : f32 to vector<8x128xf32>
    %7 = arith.subf %6, %5 : vector<8x128xf32>
    %8 = math.exp %7 : vector<8x128xf32>
    %cst_6 = arith.constant 1.000000e+00 : f32
    %9 = vector.broadcast %cst_6 : f32 to vector<8x128xf32>
    %10 = arith.addf %9, %8 : vector<8x128xf32>
    %11 = tpu.reciprocal %10 {approx = true} : vector<8x128xf32> -> vector<8x128xf32>
    %c0_7 = arith.constant 0 : index
    %c0_8 = arith.constant 0 : index
    %12 = vector.load %arg4[%c0_7, %c0_8] : memref<8x128xf32, #tpu.memory_space<vmem>>, vector<8x128xf32>
    tpu.vector_store %arg4[%c0_7, %c0_8], %11 {strides = array<i32>} : memref<8x128xf32, #tpu.memory_space<vmem>>, vector<8x128xf32>,
    return
  }
  func.func @transform_0(%arg0: i32) -> (i32, i32) {
    %c0_i32 = arith.constant 0 : i32
    %c0_i32_0 = arith.constant 0 : i32
    return %arg0, %c0_i32 : i32, i32
  }
  func.func @transform_1(%arg0: i32) -> (i32, i32) {
    %c0_i32 = arith.constant 0 : i32
    %c0_i32_0 = arith.constant 0 : i32
    %c0_i32_1 = arith.constant 0 : i32
    return %c0_i32, %c0_i32_0 : i32, i32
  }
  func.func @transform_2(%arg0: i32) -> (i32, i32) {
    %c0_i32 = arith.constant 0 : i32
    %c0_i32_0 = arith.constant 0 : i32
    %c0_i32_1 = arith.constant 0 : i32
    return %c0_i32, %c0_i32_0 : i32, i32
  }
  func.func @transform_3(%arg0: i32) -> (i32, i32) {
    %c0_i32 = arith.constant 0 : i32
    %c0_i32_0 = arith.constant 0 : i32
    return %arg0, %c0_i32 : i32, i32
  }
}

</mosaic_0001>

<llo_original>
// kernel: logistic_regression_forward.1
$region0: #{logistic_regression_forward.1}
  #allocation0 [shape = 'u32[]', space=smem, size = 0x4, offset = 0x4, fixed_abs, tag = 'smem constant byte address 0x4 - core index']
  #allocation1 [shape = 'u32[144,128]{1,0:T(1,128)}', space=vmem, size = 0x12000, scoped, tag = 'internal scratch']
  %s0 = inlined_call_operand.vmem [shape: f32[8,128], index: 0, kind: input, shape index: {}]
  %s1 = inlined_call_operand.vmem [shape: f32[128,128], index: 1, kind: input, shape index: {}]
  %s2 = inlined_call_operand.vmem [shape: f32[1,128], index: 2, kind: input, shape index: {}]
  %s3 = inlined_call_operand.hbm [shape: f32[8,128], index: 3, kind: output, shape index: {}]
  %s4 = sld [smem:[#allocation0]]
  $region22: #{logistic_regression_forward.1} parent=0
    _
  %s6 = ssub.s32 1, %s4
  %s7 = scalar_select 0, %s6, %s4
  $region1: #{logistic_regression_forward.1} parent=0
    #allocation2 [shape = 'u8[4096]{0}', space=vmem, size = 0x1000, scoped, tag = 'output window, operand 0, single buffered']
    #allocation3 [shape = 's32[1]{0}', space=sflag, size = 0x4, scoped, tag = 'scoped memory for logistic_regression_forward.1']
    %8 = vsyncpa [#allocation3], 0
    // Predicated region
    $region2: #{logistic_regression_forward.1} parent=1 // pred_check
      _
    $region3: #{logistic_regression_forward.1} parent=1 // pred_check_branch
      %10 = sbr.rel (0) target = $region5
    $region4: #{logistic_regression_forward.1} parent=1 // pred_region
      _
    $region5: #{logistic_regression_forward.1} parent=1 // pred_fallthru
      _
    // Predicated region
    $region6: #{logistic_regression_forward.1} parent=1 // pred_check
      _
    $region7: #{logistic_regression_forward.1} parent=1 // pred_check_branch
      %12 = sbr.rel (0) target = $region9
    $region8: #{logistic_regression_forward.1} parent=1 // pred_region
      _
    $region9: #{logistic_regression_forward.1} parent=1 // pred_fallthru
      _
    // Predicated region
    $region10: #{logistic_regression_forward.1} parent=1 // pred_check
      _
    $region11: #{logistic_regression_forward.1} parent=1 // pred_check_branch
      %14 = sbr.rel (0) target = $region13
    $region12: #{logistic_regression_forward.1} parent=1 // pred_region
      _
    $region13: #{logistic_regression_forward.1} parent=1 // pred_fallthru
      _
    %v15 = vld [vmem:[%s0] sm:$0xff]
    %v16 = vld [vmem:[%s1] sm:$0xff]
    %v17 = vld [vmem:[%s1 + $0x8] sm:$0xff]
    %v18 = vld [vmem:[%s1 + $0x10] sm:$0xff]
    %v19 = vld [vmem:[%s1 + $0x18] sm:$0xff]
    %v20 = vld [vmem:[%s1 + $0x20] sm:$0xff]
    %v21 = vld [vmem:[%s1 + $0x28] sm:$0xff]
    %v22 = vld [vmem:[%s1 + $0x30] sm:$0xff]
    %v23 = vld [vmem:[%s1 + $0x38] sm:$0xff]
    %v24 = vld [vmem:[%s1 + $0x40] sm:$0xff]
    %v25 = vld [vmem:[%s1 + $0x48] sm:$0xff]
    %v26 = vld [vmem:[%s1 + $0x50] sm:$0xff]
    %v27 = vld [vmem:[%s1 + $0x58] sm:$0xff]
    %v28 = vld [vmem:[%s1 + $0x60] sm:$0xff]
    %v29 = vld [vmem:[%s1 + $0x68] sm:$0xff]
    %v30 = vld [vmem:[%s1 + $0x70] sm:$0xff]
    %v31 = vld [vmem:[%s1 + $0x78] sm:$0xff]
    %v32 = vld [vmem:[%s2] sm:$0x1]
    %v34 = vlaneseq
    %v35 = vshrl.u32 %v34, 7
    %v36 = vsub.s32 0, %v35
    %v37 = vrot.slane %v32, %v36
    %39 = vmatprep.subr.mxu0 0.0
    %40 = vmatpush1.msra.mxu0 %v31
    %41 = vmatprep.subr.mxu0 0.0
    %42 = vmatpush1.msra.mxu0 %v30
    %43 = vmatprep.subr.mxu0 0.0
    %44 = vmatpush1.msra.mxu0 %v29
    %45 = vmatprep.subr.mxu0 0.0
    %46 = vmatpush1.msra.mxu0 %v28
    %47 = vmatprep.subr.mxu0 0.0
    %48 = vmatpush1.msra.mxu0 %v27
    %49 = vmatprep.subr.mxu0 0.0
    %50 = vmatpush1.msra.mxu0 %v26
    %51 = vmatprep.subr.mxu0 0.0
    %52 = vmatpush1.msra.mxu0 %v25
    %53 = vmatprep.subr.mxu0 0.0
    %54 = vmatpush1.msra.mxu0 %v24
    %55 = vmatprep.subr.mxu0 0.0
    %56 = vmatpush1.msra.mxu0 %v23
    %57 = vmatprep.subr.mxu0 0.0
    %58 = vmatpush1.msra.mxu0 %v22
    %59 = vmatprep.subr.mxu0 0.0
    %60 = vmatpush1.msra.mxu0 %v21
    %61 = vmatprep.subr.mxu0 0.0
    %62 = vmatpush1.msra.mxu0 %v20
    %63 = vmatprep.subr.mxu0 0.0
    %64 = vmatpush1.msra.mxu0 %v19
    %65 = vmatprep.subr.mxu0 0.0
    %66 = vmatpush1.msra.mxu0 %v18
    %67 = vmatprep.subr.mxu0 0.0
    %68 = vmatpush1.msra.mxu0 %v17
    %69 = vmatprep.subr.mxu0 0.0
    %70 = vmatpush1.msra.mxu0 %v16
    %71 = vmatprep.subr.mxu0 0.0
    %72 = vmatpush2.msra.mxu0 0.0
    %73 = vmatprep.subr.mxu0 0.0
    %74 = vmatpush2.msra.mxu0 0.0
    %75 = vmatprep.subr.mxu0 0.0
    %76 = vmatpush2.msra.mxu0 0.0
    %77 = vmatprep.subr.mxu0 0.0
    %78 = vmatpush2.msra.mxu0 0.0
    %79 = vmatprep.subr.mxu0 0.0
    %80 = vmatpush2.msra.mxu0 0.0
    %81 = vmatprep.subr.mxu0 0.0
    %82 = vmatpush2.msra.mxu0 0.0
    %83 = vmatprep.subr.mxu0 0.0
    %84 = vmatpush2.msra.mxu0 0.0
    %85 = vmatprep.subr.mxu0 0.0
    %86 = vmatpush2.msra.mxu0 0.0
    %87 = vmatprep.subr.mxu0 0.0
    %88 = vmatpush2.msra.mxu0 0.0
    %89 = vmatprep.subr.mxu0 0.0
    %90 = vmatpush2.msra.mxu0 0.0
    %91 = vmatprep.subr.mxu0 0.0
    %92 = vmatpush2.msra.mxu0 0.0
    %93 = vmatprep.subr.mxu0 0.0
    %94 = vmatpush2.msra.mxu0 0.0
    %95 = vmatprep.subr.mxu0 0.0
    %96 = vmatpush2.msra.mxu0 0.0
    %97 = vmatprep.subr.mxu0 0.0
    %98 = vmatpush2.msra.mxu0 0.0
    %99 = vmatprep.subr.mxu0 0.0
    %100 = vmatpush2.msra.mxu0 0.0
    %101 = vmatprep.subr.mxu0 0.0
    %102 = vmatpush2.msra.mxu0 0.0
    %103 = vmatprep.mubr.f32.mxu0 0.0
    %104 = vmatmul.mubr.f32.gmra.mxu0 %v15
    %v105 = vpop.f32.mrf.mxu0
    %v106 = vadd.f32 %v37, %v105
    %v107 = vpop.f32.mrf.mxu0
    %108 = vdwg.mxu0
    %v109 = vsub.f32 0.0, %v106
    %v110 = vmul.f32 %v109, 1.442695
    %v111 = vpow.pop %v110
    %v112 = vadd.f32 %v111, 1.0
    %v113 = vrcp.pop %v112
    %114 = vst [vmem:[#allocation2] sm:$0xff] %v113
    // Predicated region
    $region14: #{logistic_regression_forward.1} parent=1 // pred_check
      _
    $region15: #{logistic_regression_forward.1} parent=1 // pred_check_branch
      %116 = sbr.rel (0) target = $region17
    $region16: #{logistic_regression_forward.1} parent=1 // pred_region
      %s118 = ssub.s32 128, 128
      %119 = vsyncadd [#allocation3], %s118
      %s121 = sshll.u32 [#allocation2], 4
      %s122 = int_to_ptr.vmem [resolvable:$true] %s121
      %124 = dma.vmem_to_hbm [thread:$0]  %s122, 128, %s3, [#allocation3]
    $region17: #{logistic_regression_forward.1} parent=1 // pred_fallthru
      _
    // Predicated region
    $region18: #{logistic_regression_forward.1} parent=1 // pred_check
      _
    $region19: #{logistic_regression_forward.1} parent=1 // pred_check_branch
      %126 = sbr.rel (0) target = $region21
    $region20: #{logistic_regression_forward.1} parent=1 // pred_region
      %127 = dma.done [#allocation3], 128
    $region21: #{logistic_regression_forward.1} parent=1 // pred_fallthru
      _
    %128 = vsyncpa [#allocation3], 1

</llo_original>
